<compile_context>
chip_gen: v7x
topology: tpu7x:2x2x1
jax: 0.10.0
libtpu: 0.0.40
codegen_flags: <defaults>
</compile_context>

<pallas_src>
import jax
import jax.numpy as jnp
from jax.experimental import pallas as pl
from jax.experimental.pallas import tpu as pltpu


def _round_up(n, m):
    return ((n + m - 1) // m) * m


def _is_v7():
    """Best-effort TPU-generation sniff (never raises)."""
    try:
        kind = jax.devices()[0].device_kind.lower()
    except Exception:
        return False
    return "v7" in kind


def _as_dtype(a, dt):
    return a if a.dtype == dt else a.astype(dt)


def _make_ffnn_kernel(n_hidden_layers):
    """Builds a kernel for a fixed (static) number of hidden layers."""
    n_hidden = n_hidden_layers - 1  # number of internal (H, H) Linear layers

    def kernel(*refs):
        # refs = [x, w_in, b_in, (w_h, b_h) * n_hidden, w_out, b_out, o]
        x_ref = refs[0]
        w_in_ref, b_in_ref = refs[1], refs[2]
        w_out_ref, b_out_ref = refs[-3], refs[-2]
        o_ref = refs[-1]
        hidden_refs = refs[3:3 + 2 * n_hidden]

        # In-kernel f32 -> bf16 cast (VPU), then MXU matmul with f32 accumulate.
        x_bf = x_ref[...].astype(jnp.bfloat16)
        h = jnp.dot(x_bf, w_in_ref[...], preferred_element_type=jnp.float32)
        h = jnp.maximum(h + b_in_ref[...], 0.0)

        # Hidden Linear + ReLU layers (statically unrolled).
        for li in range(n_hidden):
            w_ref = hidden_refs[2 * li]
            b_ref = hidden_refs[2 * li + 1]
            h = jnp.dot(h.astype(jnp.bfloat16), w_ref[...],
                        preferred_element_type=jnp.float32)
            h = jnp.maximum(h + b_ref[...], 0.0)

        # Output Linear (no activation), stored f32, lane-dense last dim.
        out = jnp.dot(h.astype(jnp.bfloat16), w_out_ref[...],
                      preferred_element_type=jnp.float32)
        o_ref[...] = (out + b_out_ref[...]).astype(o_ref.dtype)

    return kernel


def ffnn_forward(x, params, *, row_tile=None, dimension_semantics=("parallel",)):
    """FFNN forward.  x: (B, ...) -> (B, n_components) float32.

    x is consumed as-is (f32 or bf16); the bf16 cast for the MXU happens
    inside the kernel, so no extra HBM pass over the activations is made.
    """
    w_in, b_in, hidden, w_out, b_out = params
    B = x.shape[0]
    x2 = x.reshape(B, -1)                       # == torch x.view(B, -1); no cast
    d_in = x2.shape[1]
    H = w_in.shape[1]
    n_comp = w_out.shape[1]
    n_hidden = len(hidden)

    # Generation-aware tile / VMEM budget: v7x has 64 MiB physical VMEM, so
    # cap the row tile and scoped-VMEM limit there; v5e/v6e (128 MiB) can go
    # bigger.
    is_v7 = _is_v7()
    max_tile = row_tile if row_tile is not None else (1024 if is_v7 else 2048)
    vmem_limit = (48 if is_v7 else 64) * 1024 * 1024

    # Row tile: multiple of 8 sublanes, covers B with a cdiv grid (the partial
    # tail block is masked by Pallas -> no padding pass over x).
    tb = min(max_tile, _round_up(B, 8))
    grid = (pl.cdiv(B, tb),)

    # Flatten params; matmul weights bf16, biases f32 (no-op if pre-cast).
    flat_w = [_as_dtype(w_in, jnp.bfloat16), _as_dtype(b_in, jnp.float32)]
    for (w, b) in hidden:
        flat_w += [_as_dtype(w, jnp.bfloat16), _as_dtype(b, jnp.float32)]
    flat_w += [_as_dtype(w_out, jnp.bfloat16), _as_dtype(b_out, jnp.float32)]

    # Weights/biases: full-extent blocks, constant index_map -> VMEM resident
    # (same block revisited every step => no per-step DMA).
    weight_specs = [pl.BlockSpec(a.shape, lambda i: (0, 0)) for a in flat_w]

    # Advisory cost estimate so XLA can schedule the producer of x to overlap.
    flops = 2 * B * (d_in * H + n_hidden * H * H + H * n_comp)
    param_bytes = sum(int(a.size) * a.dtype.itemsize for a in flat_w)
    bytes_accessed = int(x2.size) * x2.dtype.itemsize + B * n_comp * 4 + param_bytes

    out = pl.pallas_call(
        _make_ffnn_kernel(n_hidden + 1),
        out_shape=jax.ShapeDtypeStruct((B, n_comp), jnp.float32),
        grid_spec=pltpu.PrefetchScalarGridSpec(
            num_scalar_prefetch=0,
            grid=grid,
            in_specs=[pl.BlockSpec((tb, d_in), lambda i: (i, 0))] + weight_specs,
            out_specs=pl.BlockSpec((tb, n_comp), lambda i: (i, 0)),
        ),
        compiler_params=pltpu.CompilerParams(
            dimension_semantics=dimension_semantics,
            vmem_limit_bytes=vmem_limit,
        ),
        cost_estimate=pl.CostEstimate(
            flops=flops, transcendentals=0, bytes_accessed=bytes_accessed),
    )(x2, *flat_w)

    return out


def init_params(key, input_dim, internal_dim, n_components, n_hidden_layers=2):
    """Params pre-cast to their kernel dtypes: bf16 matmul weights, f32 biases."""
    ks = jax.random.split(key, 2 * (n_hidden_layers + 1))
    scale = 0.05
    w_in = (scale * jax.random.normal(ks[0], (input_dim, internal_dim),
                                      jnp.float32)).astype(jnp.bfloat16)
    b_in = scale * jax.random.normal(ks[1], (1, internal_dim), jnp.float32)
    hidden = []
    for i in range(n_hidden_layers - 1):
        w = (scale * jax.random.normal(ks[2 + 2 * i], (internal_dim, internal_dim),
                                       jnp.float32)).astype(jnp.bfloat16)
        b = scale * jax.random.normal(ks[3 + 2 * i], (1, internal_dim), jnp.float32)
        hidden.append((w, b))
    w_out = (scale * jax.random.normal(ks[-2], (internal_dim, n_components),
                                       jnp.float32)).astype(jnp.bfloat16)
    b_out = scale * jax.random.normal(ks[-1], (1, n_components), jnp.float32)
    return (w_in, b_in, hidden, w_out, b_out)


def reference_forward(x, params):
    """Pure-JAX reference mirroring the PyTorch forward with the same
    bf16-operand / f32-accumulate recipe as the kernel."""
    w_in, b_in, hidden, w_out, b_out = params
    B = x.shape[0]
    h = x.reshape(B, -1).astype(jnp.bfloat16)
    h = jnp.dot(h, _as_dtype(w_in, jnp.bfloat16),
                preferred_element_type=jnp.float32) + b_in
    h = jnp.maximum(h, 0.0)
    for (w, b) in hidden:
        h = jnp.dot(h.astype(jnp.bfloat16), _as_dtype(w, jnp.bfloat16),
                    preferred_element_type=jnp.float32) + b
        h = jnp.maximum(h, 0.0)
    out = jnp.dot(h.astype(jnp.bfloat16), _as_dtype(w_out, jnp.bfloat16),
                  preferred_element_type=jnp.float32) + b_out
    return out


if __name__ == "__main__":
    # x.view(B, -1) in the module -> any trailing shape works; use (2,4,16,16)
    # so input_dim = 4*16*16 = 1024 (lane-dense), internal_dim=256,
    # n_components=128, n_hidden_layers=2 (one internal hidden Linear).
    B, C_img, H_img, W_img = 2, 4, 16, 16
    input_dim = C_img * H_img * W_img
    internal_dim = 256
    n_components = 128
    n_hidden_layers = 2

    key = jax.random.PRNGKey(0)
    kx, kp = jax.random.split(key)
    x = jax.random.normal(kx, (B, C_img, H_img, W_img), jnp.float32)
    params = init_params(kp, input_dim, internal_dim, n_components,
                         n_hidden_layers)

    y = ffnn_forward(x, params)
    jax.block_until_ready(y)

    y_ref = reference_forward(x, params)
    assert y.shape == (B, n_components)
    assert jnp.allclose(y, y_ref, atol=1e-2, rtol=1e-2), "mismatch vs reference"

    print("KERNEL_OK")
</pallas_src>

<mosaic_0001>
module attributes {stable_mosaic.version = 11 : i64} {
  func.func @kernel(%arg0: i32, %arg1: memref<8x1024xf32, #tpu.memory_space<vmem>>, %arg2: memref<1024x256xbf16, #tpu.memory_space<vmem>>, %arg3: memref<1x256xf32, #tpu.memory_space<vmem>>, %arg4: memref<256x256xbf16, #tpu.memory_space<vmem>>, %arg5: memref<1x256xf32, #tpu.memory_space<vmem>>, %arg6: memref<256x128xbf16, #tpu.memory_space<vmem>>, %arg7: memref<1x128xf32, #tpu.memory_space<vmem>>, %arg8: memref<8x128xf32, #tpu.memory_space<vmem>>) attributes {dimension_semantics = [#tpu.dimension_semantics<parallel>], iteration_bounds = array<i64: 1>, scalar_prefetch = 0 : i64, scratch_operands = 0 : i64, tpu.core_type = #tpu.core_type<tc>, window_params = [{transform_indices = @transform_0, window_bounds = array<i64: 8, 1024>}, {pipeline_mode = #tpu.pipeline_mode<synchronous>, transform_indices = @transform_1, window_bounds = array<i64: 1024, 256>}, {pipeline_mode = #tpu.pipeline_mode<synchronous>, transform_indices = @transform_2, window_bounds = array<i64: 1, 256>}, {pipeline_mode = #tpu.pipeline_mode<synchronous>, transform_indices = @transform_3, window_bounds = array<i64: 256, 256>}, {pipeline_mode = #tpu.pipeline_mode<synchronous>, transform_indices = @transform_4, window_bounds = array<i64: 1, 256>}, {pipeline_mode = #tpu.pipeline_mode<synchronous>, transform_indices = @transform_5, window_bounds = array<i64: 256, 128>}, {pipeline_mode = #tpu.pipeline_mode<synchronous>, transform_indices = @transform_6, window_bounds = array<i64: 1, 128>}, {transform_indices = @transform_7, window_bounds = array<i64: 8, 128>}]} {
    %c0 = arith.constant 0 : index
    %c0_0 = arith.constant 0 : index
    %0 = vector.load %arg1[%c0, %c0_0] : memref<8x1024xf32, #tpu.memory_space<vmem>>, vector<8x1024xf32>
    %1 = arith.truncf %0 : vector<8x1024xf32> to vector<8x1024xbf16>
    %c0_1 = arith.constant 0 : index
    %c0_2 = arith.constant 0 : index
    %2 = vector.load %arg2[%c0_1, %c0_2] : memref<1024x256xbf16, #tpu.memory_space<vmem>>, vector<1024x256xbf16>
    %cst = arith.constant dense<0.000000e+00> : vector<8x256xf32>
    %3 = tpu.matmul %1, %2, %cst {dimension_numbers = #tpu.dot_dimension_numbers<[1], [0], [0], [1], [0, 0, 1, 1], [], []>} : vector<8x1024xbf16>, vector<1024x256xbf16>, vector<8x256xf32> -> vector<8x256xf32>
    %c0_3 = arith.constant 0 : index
    %c0_4 = arith.constant 0 : index
    %4 = vector.load %arg3[%c0_3, %c0_4] : memref<1x256xf32, #tpu.memory_space<vmem>>, vector<1x256xf32>
    %5 = vector.broadcast %4 : vector<1x256xf32> to vector<8x256xf32>
    %6 = arith.addf %3, %5 : vector<8x256xf32>
    %cst_5 = arith.constant 0.000000e+00 : f32
    %7 = vector.broadcast %cst_5 : f32 to vector<8x256xf32>
    %8 = arith.maximumf %6, %7 : vector<8x256xf32>
    %9 = arith.truncf %8 : vector<8x256xf32> to vector<8x256xbf16>
    %c0_6 = arith.constant 0 : index
    %c0_7 = arith.constant 0 : index
    %10 = vector.load %arg4[%c0_6, %c0_7] : memref<256x256xbf16, #tpu.memory_space<vmem>>, vector<256x256xbf16>
    %cst_8 = arith.constant dense<0.000000e+00> : vector<8x256xf32>
    %11 = tpu.matmul %9, %10, %cst_8 {dimension_numbers = #tpu.dot_dimension_numbers<[1], [0], [0], [1], [0, 0, 1, 1], [], []>} : vector<8x256xbf16>, vector<256x256xbf16>, vector<8x256xf32> -> vector<8x256xf32>
    %c0_9 = arith.constant 0 : index
    %c0_10 = arith.constant 0 : index
    %12 = vector.load %arg5[%c0_9, %c0_10] : memref<1x256xf32, #tpu.memory_space<vmem>>, vector<1x256xf32>
    %13 = vector.broadcast %12 : vector<1x256xf32> to vector<8x256xf32>
    %14 = arith.addf %11, %13 : vector<8x256xf32>
    %cst_11 = arith.constant 0.000000e+00 : f32
    %15 = vector.broadcast %cst_11 : f32 to vector<8x256xf32>
    %16 = arith.maximumf %14, %15 : vector<8x256xf32>
    %17 = arith.truncf %16 : vector<8x256xf32> to vector<8x256xbf16>
    %c0_12 = arith.constant 0 : index
    %c0_13 = arith.constant 0 : index
    %18 = vector.load %arg6[%c0_12, %c0_13] : memref<256x128xbf16, #tpu.memory_space<vmem>>, vector<256x128xbf16>
    %cst_14 = arith.constant dense<0.000000e+00> : vector<8x128xf32>
    %19 = tpu.matmul %17, %18, %cst_14 {dimension_numbers = #tpu.dot_dimension_numbers<[1], [0], [0], [1], [0, 0, 1, 1], [], []>} : vector<8x256xbf16>, vector<256x128xbf16>, vector<8x128xf32> -> vector<8x128xf32>
    %c0_15 = arith.constant 0 : index
    %c0_16 = arith.constant 0 : index
    %20 = vector.load %arg7[%c0_15, %c0_16] : memref<1x128xf32, #tpu.memory_space<vmem>>, vector<1x128xf32>
    %21 = vector.broadcast %20 : vector<1x128xf32> to vector<8x128xf32>
    %22 = arith.addf %19, %21 : vector<8x128xf32>
    %c0_17 = arith.constant 0 : index
    %c0_18 = arith.constant 0 : index
    %23 = vector.load %arg8[%c0_17, %c0_18] : memref<8x128xf32, #tpu.memory_space<vmem>>, vector<8x128xf32>
    tpu.vector_store %arg8[%c0_17, %c0_18], %22 {strides = array<i32>} : memref<8x128xf32, #tpu.memory_space<vmem>>, vector<8x128xf32>,
    return
  }
  func.func @transform_0(%arg0: i32) -> (i32, i32) {
    %c0_i32 = arith.constant 0 : i32
    %c0_i32_0 = arith.constant 0 : i32
    return %arg0, %c0_i32 : i32, i32
  }
  func.func @transform_1(%arg0: i32) -> (i32, i32) {
    %c0_i32 = arith.constant 0 : i32
    %c0_i32_0 = arith.constant 0 : i32
    %c0_i32_1 = arith.constant 0 : i32
    return %c0_i32, %c0_i32_0 : i32, i32
  }
  func.func @transform_2(%arg0: i32) -> (i32, i32) {
    %c0_i32 = arith.constant 0 : i32
    %c0_i32_0 = arith.constant 0 : i32
    %c0_i32_1 = arith.constant 0 : i32
    return %c0_i32, %c0_i32_0 : i32, i32
  }
  func.func @transform_3(%arg0: i32) -> (i32, i32) {
    %c0_i32 = arith.constant 0 : i32
    %c0_i32_0 = arith.constant 0 : i32
    %c0_i32_1 = arith.constant 0 : i32
    return %c0_i32, %c0_i32_0 : i32, i32
  }
  func.func @transform_4(%arg0: i32) -> (i32, i32) {
    %c0_i32 = arith.constant 0 : i32
    %c0_i32_0 = arith.constant 0 : i32
    %c0_i32_1 = arith.constant 0 : i32
    return %c0_i32, %c0_i32_0 : i32, i32
  }
  func.func @transform_5(%arg0: i32) -> (i32, i32) {
    %c0_i32 = arith.constant 0 : i32
    %c0_i32_0 = arith.constant 0 : i32
    %c0_i32_1 = arith.constant 0 : i32
    return %c0_i32, %c0_i32_0 : i32, i32
  }
  func.func @transform_6(%arg0: i32) -> (i32, i32) {
    %c0_i32 = arith.constant 0 : i32
    %c0_i32_0 = arith.constant 0 : i32
    %c0_i32_1 = arith.constant 0 : i32
    return %c0_i32, %c0_i32_0 : i32, i32
  }
  func.func @transform_7(%arg0: i32) -> (i32, i32) {
    %c0_i32 = arith.constant 0 : i32
    %c0_i32_0 = arith.constant 0 : i32
    return %arg0, %c0_i32 : i32, i32
  }
}

</mosaic_0001>

<llo_original>
// kernel: tpu_custom_call.1
$region0: #{tpu_custom_call.1}
  #allocation0 [shape = 'u32[]', space=smem, size = 0x4, offset = 0x4, fixed_abs, tag = 'smem constant byte address 0x4 - core index']
  #allocation1 [shape = 'u32[144,128]{1,0:T(1,128)}', space=vmem, size = 0x12000, scoped, tag = 'internal scratch']
  %s0 = inlined_call_operand.hbm [shape: f32[2,1024], index: 0, kind: input, shape index: {}]
  %s1 = inlined_call_operand.hbm [shape: bf16[1024,256], index: 1, kind: input, shape index: {}]
  %s2 = inlined_call_operand.hbm [shape: f32[1,256], index: 2, kind: input, shape index: {}]
  %s3 = inlined_call_operand.hbm [shape: bf16[256,256], index: 3, kind: input, shape index: {}]
  %s4 = inlined_call_operand.hbm [shape: f32[1,256], index: 4, kind: input, shape index: {}]
  %s5 = inlined_call_operand.hbm [shape: bf16[256,128], index: 5, kind: input, shape index: {}]
  %s6 = inlined_call_operand.hbm [shape: f32[1,128], index: 6, kind: input, shape index: {}]
  %s7 = inlined_call_operand.hbm [shape: f32[2,128], index: 7, kind: output, shape index: {}]
  %s8 = sld [smem:[#allocation0]]
  $region66: #{tpu_custom_call.1} parent=0
    _
  %s10 = ssub.s32 1, %s8
  %s11 = scalar_select 0, %s10, %s8
  $region1: #{tpu_custom_call.1} parent=0
    #allocation2 [shape = 'u8[32768]{0}', space=vmem, size = 0x8000, scoped, tag = 'input window, operand 0, single buffered']
    #allocation3 [shape = 's32[1]{0}', space=sflag, size = 0x4, scoped, tag = 'scoped memory for tpu_custom_call.1']
    #allocation4 [shape = 's32[1]{0}', space=sflag, size = 0x4, scoped, tag = 'scoped memory for tpu_custom_call.1']
    #allocation5 [shape = 'u8[524288]{0}', space=vmem, size = 0x80000, scoped, tag = 'input window, operand 1, single buffered']
    #allocation6 [shape = 's32[1]{0}', space=sflag, size = 0x4, scoped, tag = 'scoped memory for tpu_custom_call.1']
    #allocation7 [shape = 'u8[1024]{0}', space=vmem, size = 0x400, scoped, tag = 'input window, operand 2, single buffered']
    #allocation8 [shape = 'u8[131072]{0}', space=vmem, size = 0x20000, scoped, tag = 'input window, operand 3, single buffered']
    #allocation9 [shape = 's32[1]{0}', space=sflag, size = 0x4, scoped, tag = 'scoped memory for tpu_custom_call.1']
    #allocation10 [shape = 'u8[1024]{0}', space=vmem, size = 0x400, scoped, tag = 'input window, operand 4, single buffered']
    #allocation11 [shape = 'u8[65536]{0}', space=vmem, size = 0x10000, scoped, tag = 'input window, operand 5, single buffered']
    #allocation12 [shape = 's32[1]{0}', space=sflag, size = 0x4, scoped, tag = 'scoped memory for tpu_custom_call.1']
    #allocation13 [shape = 'u8[512]{0}', space=vmem, size = 0x400, scoped, tag = 'input window, operand 6, single buffered']
    #allocation14 [shape = 'u8[4096]{0}', space=vmem, size = 0x1000, scoped, tag = 'output window, operand 0, single buffered']
    %12 = vsyncpa [#allocation3], 0
    %13 = vsyncpa [#allocation6], 0
    %14 = vsyncpa [#allocation9], 0
    %15 = vsyncpa [#allocation12], 0
    %16 = vsyncpa [#allocation4], 0
    // Predicated region
    $region2: #{tpu_custom_call.1} parent=1 // pred_check
      _
    $region3: #{tpu_custom_call.1} parent=1 // pred_check_branch
      %18 = sbr.rel (0) target = $region5
    $region4: #{tpu_custom_call.1} parent=1 // pred_region
      %s20 = ssub.s32 1024, 256
      %21 = vsyncadd [#allocation3], %s20
      %s22 = sshll.u32 [#allocation2], 4
      %s23 = int_to_ptr.vmem [resolvable:$true] %s22
      %28 = dma.hbm_to_vmem [thread:$0]  %s0, 256, %s23, [#allocation3], 256, 256, 16
    $region5: #{tpu_custom_call.1} parent=1 // pred_fallthru
      _
    // Predicated region
    $region6: #{tpu_custom_call.1} parent=1 // pred_check
      _
    $region7: #{tpu_custom_call.1} parent=1 // pred_check_branch
      %30 = sbr.rel (0) target = $region9
    $region8: #{tpu_custom_call.1} parent=1 // pred_region
      %s32 = ssub.s32 16384, 16384
      %33 = vsyncadd [#allocation6], %s32
      %s34 = sshll.u32 [#allocation5], 4
      %s35 = int_to_ptr.vmem [resolvable:$true] %s34
      %40 = dma.hbm_to_vmem [thread:$0]  %s1, 16384, %s35, [#allocation6], 128, 128, 8
    $region9: #{tpu_custom_call.1} parent=1 // pred_fallthru
      _
    // Predicated region
    $region10: #{tpu_custom_call.1} parent=1 // pred_check
      _
    $region11: #{tpu_custom_call.1} parent=1 // pred_check_branch
      %42 = sbr.rel (0) target = $region13
    $region12: #{tpu_custom_call.1} parent=1 // pred_region
      %s44 = ssub.s32 32, 32
      %45 = vsyncadd [#allocation6], %s44
      %s47 = sshll.u32 [#allocation7], 4
      %s48 = int_to_ptr.vmem [resolvable:$true] %s47
      %50 = dma.hbm_to_vmem [thread:$0]  %s2, 32, %s48, [#allocation6]
    $region13: #{tpu_custom_call.1} parent=1 // pred_fallthru
      _
    // Predicated region
    $region14: #{tpu_custom_call.1} parent=1 // pred_check
      _
    $region15: #{tpu_custom_call.1} parent=1 // pred_check_branch
      %52 = sbr.rel (0) target = $region17
    $region16: #{tpu_custom_call.1} parent=1 // pred_region
      %s54 = ssub.s32 4096, 4096
      %55 = vsyncadd [#allocation9], %s54
      %s56 = sshll.u32 [#allocation8], 4
      %s57 = int_to_ptr.vmem [resolvable:$true] %s56
      %62 = dma.hbm_to_vmem [thread:$0]  %s3, 4096, %s57, [#allocation9], 128, 128, 8
    $region17: #{tpu_custom_call.1} parent=1 // pred_fallthru
      _
    // Predicated region
    $region18: #{tpu_custom_call.1} parent=1 // pred_check
      _
    $region19: #{tpu_custom_call.1} parent=1 // pred_check_branch
      %64 = sbr.rel (0) target = $region21
    $region20: #{tpu_custom_call.1} parent=1 // pred_region
      %s66 = ssub.s32 32, 32
      %67 = vsyncadd [#allocation9], %s66
      %s69 = sshll.u32 [#allocation10], 4
      %s70 = int_to_ptr.vmem [resolvable:$true] %s69
      %72 = dma.hbm_to_vmem [thread:$0]  %s4, 32, %s70, [#allocation9]
    $region21: #{tpu_custom_call.1} parent=1 // pred_fallthru
      _
    // Predicated region
    $region22: #{tpu_custom_call.1} parent=1 // pred_check
      _
    $region23: #{tpu_custom_call.1} parent=1 // pred_check_branch
      %74 = sbr.rel (0) target = $region25
    $region24: #{tpu_custom_call.1} parent=1 // pred_region
      %s76 = ssub.s32 2048, 2048
      %77 = vsyncadd [#allocation12], %s76
      %s78 = sshll.u32 [#allocation11], 4
      %s79 = int_to_ptr.vmem [resolvable:$true] %s78
      %84 = dma.hbm_to_vmem [thread:$0]  %s5, 2048, %s79, [#allocation12], 64, 64, 4
    $region25: #{tpu_custom_call.1} parent=1 // pred_fallthru
      _
    // Predicated region
    $region26: #{tpu_custom_call.1} parent=1 // pred_check
      _
    $region27: #{tpu_custom_call.1} parent=1 // pred_check_branch
      %86 = sbr.rel (0) target = $region29
    $region28: #{tpu_custom_call.1} parent=1 // pred_region
      %s88 = ssub.s32 16, 16
      %89 = vsyncadd [#allocation12], %s88
      %s91 = sshll.u32 [#allocation13], 4
      %s92 = int_to_ptr.vmem [resolvable:$true] %s91
      %94 = dma.hbm_to_vmem [thread:$0]  %s6, 16, %s92, [#allocation12]
    $region29: #{tpu_custom_call.1} parent=1 // pred_fallthru
      _
    // Predicated region
    $region30: #{tpu_custom_call.1} parent=1 // pred_check
      _
    $region31: #{tpu_custom_call.1} parent=1 // pred_check_branch
      %96 = sbr.rel (0) target = $region33
    $region32: #{tpu_custom_call.1} parent=1 // pred_region
      %97 = dma.done [#allocation3], 1024
    $region33: #{tpu_custom_call.1} parent=1 // pred_fallthru
      _
    // Predicated region
    $region34: #{tpu_custom_call.1} parent=1 // pred_check
      _
    $region35: #{tpu_custom_call.1} parent=1 // pred_check_branch
      %99 = sbr.rel (0) target = $region37
    $region36: #{tpu_custom_call.1} parent=1 // pred_region
      %100 = dma.done [#allocation6], 16384
    $region37: #{tpu_custom_call.1} parent=1 // pred_fallthru
      _
    // Predicated region
    $region38: #{tpu_custom_call.1} parent=1 // pred_check
      _
    $region39: #{tpu_custom_call.1} parent=1 // pred_check_branch
      %102 = sbr.rel (0) target = $region41
    $region40: #{tpu_custom_call.1} parent=1 // pred_region
      %103 = dma.done [#allocation6], 32
    $region41: #{tpu_custom_call.1} parent=1 // pred_fallthru
      _
    // Predicated region
    $region42: #{tpu_custom_call.1} parent=1 // pred_check
      _
    $region43: #{tpu_custom_call.1} parent=1 // pred_check_branch
      %105 = sbr.rel (0) target = $region45
    $region44: #{tpu_custom_call.1} parent=1 // pred_region
      %106 = dma.done [#allocation9], 4096
    $region45: #{tpu_custom_call.1} parent=1 // pred_fallthru
      _
    // Predicated region
    $region46: #{tpu_custom_call.1} parent=1 // pred_check
      _
    $region47: #{tpu_custom_call.1} parent=1 // pred_check_branch
      %108 = sbr.rel (0) target = $region49
    $region48: #{tpu_custom_call.1} parent=1 // pred_region
      %109 = dma.done [#allocation9], 32
    $region49: #{tpu_custom_call.1} parent=1 // pred_fallthru
      _
    // Predicated region
    $region50: #{tpu_custom_call.1} parent=1 // pred_check
      _
    $region51: #{tpu_custom_call.1} parent=1 // pred_check_branch
      %111 = sbr.rel (0) target = $region53
    $region52: #{tpu_custom_call.1} parent=1 // pred_region
      %112 = dma.done [#allocation12], 2048
    $region53: #{tpu_custom_call.1} parent=1 // pred_fallthru
      _
    // Predicated region
    $region54: #{tpu_custom_call.1} parent=1 // pred_check
      _
    $region55: #{tpu_custom_call.1} parent=1 // pred_check_branch
      %114 = sbr.rel (0) target = $region57
    $region56: #{tpu_custom_call.1} parent=1 // pred_region
      %115 = dma.done [#allocation12], 16
    $region57: #{tpu_custom_call.1} parent=1 // pred_fallthru
      _
    %v117 = vld [vmem:[#allocation2] sm:$0xff]
    %v118 = vld [vmem:[#allocation2 + $0x8] sm:$0xff]
    %v119 = vld [vmem:[#allocation2 + $0x10] sm:$0xff]
    %v120 = vld [vmem:[#allocation2 + $0x18] sm:$0xff]
    %v121 = vld [vmem:[#allocation2 + $0x20] sm:$0xff]
    %v122 = vld [vmem:[#allocation2 + $0x28] sm:$0xff]
    %v123 = vld [vmem:[#allocation2 + $0x30] sm:$0xff]
    %v124 = vld [vmem:[#allocation2 + $0x38] sm:$0xff]
    %v133 = vcombine.low %v117, %v119
    %v134 = vcombine.high %v117, %v119
    %v135 = vcombine.low %v121, %v123
    %v136 = vcombine.high %v121, %v123
    %v138 = vunpack.c.l.s4 1983009808
    %v139 = vunpack.c.0.s8 %v138
    %v140 = vlaneseq
    %v141 = vshrl.u32 %v140, 7
    %v142 = vsub.s32 %v139, %v141
    %v143 = vrot.slane %v133, %v142
    %v145 = vunpack.c.l.s4 1983009808
    %v146 = vunpack.c.0.s8 %v145
    %v147 = vlaneseq
    %v148 = vshrl.u32 %v147, 7
    %v149 = vsub.s32 %v146, %v148
    %v150 = vrot.slane %v134, %v149
    %v152 = vunpack.c.l.s4 1983009808
    %v153 = vunpack.c.0.s8 %v152
    %v154 = vlaneseq
    %v155 = vshrl.u32 %v154, 7
    %v156 = vsub.s32 %v153, %v155
    %v157 = vrot.slane %v135, %v156
    %v159 = vunpack.c.l.s4 1983009808
    %v160 = vunpack.c.0.s8 %v159
    %v161 = vlaneseq
    %v162 = vshrl.u32 %v161, 7
    %v163 = vsub.s32 %v160, %v162
    %v164 = vrot.slane %v136, %v163
    %v165 = vcombine.low %v143, %v157
    %v166 = vcombine.high %v143, %v157
    %v167 = vcombine.low %v150, %v164
    %v168 = vcombine.high %v150, %v164
    %v169 = vcombine.low %v118, %v120
    %v170 = vcombine.high %v118, %v120
    %v171 = vcombine.low %v122, %v124
    %v172 = vcombine.high %v122, %v124
    %v174 = vunpack.c.l.s4 1983009808
    %v175 = vunpack.c.0.s8 %v174
    %v176 = vlaneseq
    %v177 = vshrl.u32 %v176, 7
    %v178 = vsub.s32 %v175, %v177
    %v179 = vrot.slane %v169, %v178
    %v181 = vunpack.c.l.s4 1983009808
    %v182 = vunpack.c.0.s8 %v181
    %v183 = vlaneseq
    %v184 = vshrl.u32 %v183, 7
    %v185 = vsub.s32 %v182, %v184
    %v186 = vrot.slane %v170, %v185
    %v188 = vunpack.c.l.s4 1983009808
    %v189 = vunpack.c.0.s8 %v188
    %v190 = vlaneseq
    %v191 = vshrl.u32 %v190, 7
    %v192 = vsub.s32 %v189, %v191
    %v193 = vrot.slane %v171, %v192
    %v195 = vunpack.c.l.s4 1983009808
    %v196 = vunpack.c.0.s8 %v195
    %v197 = vlaneseq
    %v198 = vshrl.u32 %v197, 7
    %v199 = vsub.s32 %v196, %v198
    %v200 = vrot.slane %v172, %v199
    %v201 = vcombine.low %v179, %v193
    %v202 = vcombine.high %v179, %v193
    %v203 = vcombine.low %v186, %v200
    %v204 = vcombine.high %v186, %v200
    %v213 = vpack.c.bf16 %v165, %v165
    %v214 = vpack.c.bf16 %v166, %v166
    %v215 = vpack.c.bf16 %v167, %v167
    %v216 = vpack.c.bf16 %v168, %v168
    %v217 = vpack.c.bf16 %v201, %v201
    %v218 = vpack.c.bf16 %v202, %v202
    %v219 = vpack.c.bf16 %v203, %v203
    %v220 = vpack.c.bf16 %v204, %v204
    %v221 = vld [vmem:[#allocation5] sm:$0xff]
    %v222 = vld [vmem:[#allocation5 + $0x8] sm:$0xff]
    %v223 = vld [vmem:[#allocation5 + $0x10] sm:$0xff]
    %v224 = vld [vmem:[#allocation5 + $0x18] sm:$0xff]
    %v225 = vld [vmem:[#allocation5 + $0x20] sm:$0xff]
    %v226 = vld [vmem:[#allocation5 + $0x28] sm:$0xff]
    %v227 = vld [vmem:[#allocation5 + $0x30] sm:$0xff]
    %v228 = vld [vmem:[#allocation5 + $0x38] sm:$0xff]
    %v229 = vld [vmem:[#allocation5 + $0x40] sm:$0xff]
    %v230 = vld [vmem:[#allocation5 + $0x48] sm:$0xff]
    %v231 = vld [vmem:[#allocation5 + $0x50] sm:$0xff]
    %v232 = vld [vmem:[#allocation5 + $0x58] sm:$0xff]
    %v233 = vld [vmem:[#allocation5 + $0x60] sm:$0xff]
    %v234 = vld [vmem:[#allocation5 + $0x68] sm:$0xff]
    %v235 = vld [vmem:[#allocation5 + $0x70] sm:$0xff]
    %v236 = vld [vmem:[#allocation5 + $0x78] sm:$0xff]
    %v237 = vld [vmem:[#allocation5 + $0x80] sm:$0xff]
    %v238 = vld [vmem:[#allocation5 + $0x88] sm:$0xff]
    %v239 = vld [vmem:[#allocation5 + $0x90] sm:$0xff]
    %v240 = vld [vmem:[#allocation5 + $0x98] sm:$0xff]
    %v241 = vld [vmem:[#allocation5 + $0xa0] sm:$0xff]
    %v242 = vld [vmem:[#allocation5 + $0xa8] sm:$0xff]
    %v243 = vld [vmem:[#allocation5 + $0xb0] sm:$0xff]
    %v244 = vld [vmem:[#allocation5 + $0xb8] sm:$0xff]
    %v245 = vld [vmem:[#allocation5 + $0xc0] sm:$0xff]
    %v246 = vld [vmem:[#allocation5 + $0xc8] sm:$0xff]
    %v247 = vld [vmem:[#allocation5 + $0xd0] sm:$0xff]
    %v248 = vld [vmem:[#allocation5 + $0xd8] sm:$0xff]
    %v249 = vld [vmem:[#allocation5 + $0xe0] sm:$0xff]
    %v250 = vld [vmem:[#allocation5 + $0xe8] sm:$0xff]
    %v251 = vld [vmem:[#allocation5 + $0xf0] sm:$0xff]
    %v252 = vld [vmem:[#allocation5 + $0xf8] sm:$0xff]
    %v253 = vld [vmem:[#allocation5 + $0x100] sm:$0xff]
    %v254 = vld [vmem:[#allocation5 + $0x108] sm:$0xff]
    %v255 = vld [vmem:[#allocation5 + $0x110] sm:$0xff]
    %v256 = vld [vmem:[#allocation5 + $0x118] sm:$0xff]
    %v257 = vld [vmem:[#allocation5 + $0x120] sm:$0xff]
    %v258 = vld [vmem:[#allocation5 + $0x128] sm:$0xff]
    %v259 = vld [vmem:[#allocation5 + $0x130] sm:$0xff]
    %v260 = vld [vmem:[#allocation5 + $0x138] sm:$0xff]
    %v261 = vld [vmem:[#allocation5 + $0x140] sm:$0xff]
    %v262 = vld [vmem:[#allocation5 + $0x148] sm:$0xff]
    %v263 = vld [vmem:[#allocation5 + $0x150] sm:$0xff]
    %v264 = vld [vmem:[#allocation5 + $0x158] sm:$0xff]
    %v265 = vld [vmem:[#allocation5 + $0x160] sm:$0xff]
    %v266 = vld [vmem:[#allocation5 + $0x168] sm:$0xff]
    %v267 = vld [vmem:[#allocation5 + $0x170] sm:$0xff]
    %v268 = vld [vmem:[#allocation5 + $0x178] sm:$0xff]
    %v269 = vld [vmem:[#allocation5 + $0x180] sm:$0xff]
    %v270 = vld [vmem:[#allocation5 + $0x188] sm:$0xff]
    %v271 = vld [vmem:[#allocation5 + $0x190] sm:$0xff]
    %v272 = vld [vmem:[#allocation5 + $0x198] sm:$0xff]
    %v273 = vld [vmem:[#allocation5 + $0x1a0] sm:$0xff]
    %v274 = vld [vmem:[#allocation5 + $0x1a8] sm:$0xff]
    %v275 = vld [vmem:[#allocation5 + $0x1b0] sm:$0xff]
    %v276 = vld [vmem:[#allocation5 + $0x1b8] sm:$0xff]
    %v277 = vld [vmem:[#allocation5 + $0x1c0] sm:$0xff]
    %v278 = vld [vmem:[#allocation5 + $0x1c8] sm:$0xff]
    %v279 = vld [vmem:[#allocation5 + $0x1d0] sm:$0xff]
    %v280 = vld [vmem:[#allocation5 + $0x1d8] sm:$0xff]
    %v281 = vld [vmem:[#allocation5 + $0x1e0] sm:$0xff]
    %v282 = vld [vmem:[#allocation5 + $0x1e8] sm:$0xff]
    %v283 = vld [vmem:[#allocation5 + $0x1f0] sm:$0xff]
    %v284 = vld [vmem:[#allocation5 + $0x1f8] sm:$0xff]
    %v285 = vld [vmem:[#allocation5 + $0x200] sm:$0xff]
    %v286 = vld [vmem:[#allocation5 + $0x208] sm:$0xff]
    %v287 = vld [vmem:[#allocation5 + $0x210] sm:$0xff]
    %v288 = vld [vmem:[#allocation5 + $0x218] sm:$0xff]
    %v289 = vld [vmem:[#allocation5 + $0x220] sm:$0xff]
    %v290 = vld [vmem:[#allocation5 + $0x228] sm:$0xff]
    %v291 = vld [vmem:[#allocation5 + $0x230] sm:$0xff]
    %v292 = vld [vmem:[#allocation5 + $0x238] sm:$0xff]
    %v293 = vld [vmem:[#allocation5 + $0x240] sm:$0xff]
    %v294 = vld [vmem:[#allocation5 + $0x248] sm:$0xff]
    %v295 = vld [vmem:[#allocation5 + $0x250] sm:$0xff]
    %v296 = vld [vmem:[#allocation5 + $0x258] sm:$0xff]
    %v297 = vld [vmem:[#allocation5 + $0x260] sm:$0xff]
    %v298 = vld [vmem:[#allocation5 + $0x268] sm:$0xff]
    %v299 = vld [vmem:[#allocation5 + $0x270] sm:$0xff]
    %v300 = vld [vmem:[#allocation5 + $0x278] sm:$0xff]
    %v301 = vld [vmem:[#allocation5 + $0x280] sm:$0xff]
    %v302 = vld [vmem:[#allocation5 + $0x288] sm:$0xff]
    %v303 = vld [vmem:[#allocation5 + $0x290] sm:$0xff]
    %v304 = vld [vmem:[#allocation5 + $0x298] sm:$0xff]
    %v305 = vld [vmem:[#allocation5 + $0x2a0] sm:$0xff]
    %v306 = vld [vmem:[#allocation5 + $0x2a8] sm:$0xff]
    %v307 = vld [vmem:[#allocation5 + $0x2b0] sm:$0xff]
    %v308 = vld [vmem:[#allocation5 + $0x2b8] sm:$0xff]
    %v309 = vld [vmem:[#allocation5 + $0x2c0] sm:$0xff]
    %v310 = vld [vmem:[#allocation5 + $0x2c8] sm:$0xff]
    %v311 = vld [vmem:[#allocation5 + $0x2d0] sm:$0xff]
    %v312 = vld [vmem:[#allocation5 + $0x2d8] sm:$0xff]
    %v313 = vld [vmem:[#allocation5 + $0x2e0] sm:$0xff]
    %v314 = vld [vmem:[#allocation5 + $0x2e8] sm:$0xff]
    %v315 = vld [vmem:[#allocation5 + $0x2f0] sm:$0xff]
    %v316 = vld [vmem:[#allocation5 + $0x2f8] sm:$0xff]
    %v317 = vld [vmem:[#allocation5 + $0x300] sm:$0xff]
    %v318 = vld [vmem:[#allocation5 + $0x308] sm:$0xff]
    %v319 = vld [vmem:[#allocation5 + $0x310] sm:$0xff]
    %v320 = vld [vmem:[#allocation5 + $0x318] sm:$0xff]
    %v321 = vld [vmem:[#allocation5 + $0x320] sm:$0xff]
    %v322 = vld [vmem:[#allocation5 + $0x328] sm:$0xff]
    %v323 = vld [vmem:[#allocation5 + $0x330] sm:$0xff]
    %v324 = vld [vmem:[#allocation5 + $0x338] sm:$0xff]
    %v325 = vld [vmem:[#allocation5 + $0x340] sm:$0xff]
    %v326 = vld [vmem:[#allocation5 + $0x348] sm:$0xff]
    %v327 = vld [vmem:[#allocation5 + $0x350] sm:$0xff]
    %v328 = vld [vmem:[#allocation5 + $0x358] sm:$0xff]
    %v329 = vld [vmem:[#allocation5 + $0x360] sm:$0xff]
    %v330 = vld [vmem:[#allocation5 + $0x368] sm:$0xff]
    %v331 = vld [vmem:[#allocation5 + $0x370] sm:$0xff]
    %v332 = vld [vmem:[#allocation5 + $0x378] sm:$0xff]
    %v333 = vld [vmem:[#allocation5 + $0x380] sm:$0xff]
    %v334 = vld [vmem:[#allocation5 + $0x388] sm:$0xff]
    %v335 = vld [vmem:[#allocation5 + $0x390] sm:$0xff]
    %v336 = vld [vmem:[#allocation5 + $0x398] sm:$0xff]
    %v337 = vld [vmem:[#allocation5 + $0x3a0] sm:$0xff]
    %v338 = vld [vmem:[#allocation5 + $0x3a8] sm:$0xff]
    %v339 = vld [vmem:[#allocation5 + $0x3b0] sm:$0xff]
    %v340 = vld [vmem:[#allocation5 + $0x3b8] sm:$0xff]
    %v341 = vld [vmem:[#allocation5 + $0x3c0] sm:$0xff]
    %v342 = vld [vmem:[#allocation5 + $0x3c8] sm:$0xff]
    %v343 = vld [vmem:[#allocation5 + $0x3d0] sm:$0xff]
    %v344 = vld [vmem:[#allocation5 + $0x3d8] sm:$0xff]
    %v345 = vld [vmem:[#allocation5 + $0x3e0] sm:$0xff]
    %v346 = vld [vmem:[#allocation5 + $0x3e8] sm:$0xff]
    %v347 = vld [vmem:[#allocation5 + $0x3f0] sm:$0xff]
    %v348 = vld [vmem:[#allocation5 + $0x3f8] sm:$0xff]
    %v349 = vld [vmem:[#allocation7] sm:$0x3]
    %v351 = vlaneseq
    %v352 = vshrl.u32 %v351, 7
    %v353 = vsub.s32 0, %v352
    %v354 = vrot.slane %v349, %v353
    %v355 = vlaneseq
    %v356 = vshrl.u32 %v355, 7
    %v357 = vsub.s32 1, %v356
    %v358 = vrot.slane %v349, %v357
    %v489 = vunpack.c.l.b16 %v221
    %v490 = vunpack.c.h.b16 %v221
    %v491 = vunpack.c.l.b16 %v222
    %v492 = vunpack.c.h.b16 %v222
    %v493 = vunpack.c.l.b16 %v223
    %v494 = vunpack.c.h.b16 %v223
    %v495 = vunpack.c.l.b16 %v224
    %v496 = vunpack.c.h.b16 %v224
    %v497 = vunpack.c.l.b16 %v225
    %v498 = vunpack.c.h.b16 %v225
    %v499 = vunpack.c.l.b16 %v226
    %v500 = vunpack.c.h.b16 %v226
    %v501 = vunpack.c.l.b16 %v227
    %v502 = vunpack.c.h.b16 %v227
    %v503 = vunpack.c.l.b16 %v228
    %v504 = vunpack.c.h.b16 %v228
    %v505 = vunpack.c.l.b16 %v229
    %v506 = vunpack.c.h.b16 %v229
    %v507 = vunpack.c.l.b16 %v230
    %v508 = vunpack.c.h.b16 %v230
    %v509 = vunpack.c.l.b16 %v231
    %v510 = vunpack.c.h.b16 %v231
    %v511 = vunpack.c.l.b16 %v232
    %v512 = vunpack.c.h.b16 %v232
    %v513 = vunpack.c.l.b16 %v233
    %v514 = vunpack.c.h.b16 %v233
    %v515 = vunpack.c.l.b16 %v234
    %v516 = vunpack.c.h.b16 %v234
    %v517 = vunpack.c.l.b16 %v235
    %v518 = vunpack.c.h.b16 %v235
    %v519 = vunpack.c.l.b16 %v236
    %v520 = vunpack.c.h.b16 %v236
    %v521 = vunpack.c.l.b16 %v237
    %v522 = vunpack.c.h.b16 %v237
    %v523 = vunpack.c.l.b16 %v238
    %v524 = vunpack.c.h.b16 %v238
    %v525 = vunpack.c.l.b16 %v239
    %v526 = vunpack.c.h.b16 %v239
    %v527 = vunpack.c.l.b16 %v240
    %v528 = vunpack.c.h.b16 %v240
    %v529 = vunpack.c.l.b16 %v241
    %v530 = vunpack.c.h.b16 %v241
    %v531 = vunpack.c.l.b16 %v242
    %v532 = vunpack.c.h.b16 %v242
    %v533 = vunpack.c.l.b16 %v243
    %v534 = vunpack.c.h.b16 %v243
    %v535 = vunpack.c.l.b16 %v244
    %v536 = vunpack.c.h.b16 %v244
    %v537 = vunpack.c.l.b16 %v245
    %v538 = vunpack.c.h.b16 %v245
    %v539 = vunpack.c.l.b16 %v246
    %v540 = vunpack.c.h.b16 %v246
    %v541 = vunpack.c.l.b16 %v247
    %v542 = vunpack.c.h.b16 %v247
    %v543 = vunpack.c.l.b16 %v248
    %v544 = vunpack.c.h.b16 %v248
    %v545 = vunpack.c.l.b16 %v249
    %v546 = vunpack.c.h.b16 %v249
    %v547 = vunpack.c.l.b16 %v250
    %v548 = vunpack.c.h.b16 %v250
    %v549 = vunpack.c.l.b16 %v251
    %v550 = vunpack.c.h.b16 %v251
    %v551 = vunpack.c.l.b16 %v252
    %v552 = vunpack.c.h.b16 %v252
    %v553 = vunpack.c.l.b16 %v253
    %v554 = vunpack.c.h.b16 %v253
    %v555 = vunpack.c.l.b16 %v254
    %v556 = vunpack.c.h.b16 %v254
    %v557 = vunpack.c.l.b16 %v255
    %v558 = vunpack.c.h.b16 %v255
    %v559 = vunpack.c.l.b16 %v256
    %v560 = vunpack.c.h.b16 %v256
    %v561 = vunpack.c.l.b16 %v257
    %v562 = vunpack.c.h.b16 %v257
    %v563 = vunpack.c.l.b16 %v258
    %v564 = vunpack.c.h.b16 %v258
    %v565 = vunpack.c.l.b16 %v259
    %v566 = vunpack.c.h.b16 %v259
    %v567 = vunpack.c.l.b16 %v260
    %v568 = vunpack.c.h.b16 %v260
    %v569 = vunpack.c.l.b16 %v261
    %v570 = vunpack.c.h.b16 %v261
    %v571 = vunpack.c.l.b16 %v262
    %v572 = vunpack.c.h.b16 %v262
    %v573 = vunpack.c.l.b16 %v263
    %v574 = vunpack.c.h.b16 %v263
    %v575 = vunpack.c.l.b16 %v264
    %v576 = vunpack.c.h.b16 %v264
    %v577 = vunpack.c.l.b16 %v265
    %v578 = vunpack.c.h.b16 %v265
    %v579 = vunpack.c.l.b16 %v266
    %v580 = vunpack.c.h.b16 %v266
    %v581 = vunpack.c.l.b16 %v267
    %v582 = vunpack.c.h.b16 %v267
    %v583 = vunpack.c.l.b16 %v268
    %v584 = vunpack.c.h.b16 %v268
    %v585 = vunpack.c.l.b16 %v269
    %v586 = vunpack.c.h.b16 %v269
    %v587 = vunpack.c.l.b16 %v270
    %v588 = vunpack.c.h.b16 %v270
    %v589 = vunpack.c.l.b16 %v271
    %v590 = vunpack.c.h.b16 %v271
    %v591 = vunpack.c.l.b16 %v272
    %v592 = vunpack.c.h.b16 %v272
    %v593 = vunpack.c.l.b16 %v273
    %v594 = vunpack.c.h.b16 %v273
    %v595 = vunpack.c.l.b16 %v274
    %v596 = vunpack.c.h.b16 %v274
    %v597 = vunpack.c.l.b16 %v275
    %v598 = vunpack.c.h.b16 %v275
    %v599 = vunpack.c.l.b16 %v276
    %v600 = vunpack.c.h.b16 %v276
    %v601 = vunpack.c.l.b16 %v277
    %v602 = vunpack.c.h.b16 %v277
    %v603 = vunpack.c.l.b16 %v278
    %v604 = vunpack.c.h.b16 %v278
    %v605 = vunpack.c.l.b16 %v279
    %v606 = vunpack.c.h.b16 %v279
    %v607 = vunpack.c.l.b16 %v280
    %v608 = vunpack.c.h.b16 %v280
    %v609 = vunpack.c.l.b16 %v281
    %v610 = vunpack.c.h.b16 %v281
    %v611 = vunpack.c.l.b16 %v282
    %v612 = vunpack.c.h.b16 %v282
    %v613 = vunpack.c.l.b16 %v283
    %v614 = vunpack.c.h.b16 %v283
    %v615 = vunpack.c.l.b16 %v284
    %v616 = vunpack.c.h.b16 %v284
    %v617 = vunpack.c.l.b16 %v285
    %v618 = vunpack.c.h.b16 %v285
    %v619 = vunpack.c.l.b16 %v286
    %v620 = vunpack.c.h.b16 %v286
    %v621 = vunpack.c.l.b16 %v287
    %v622 = vunpack.c.h.b16 %v287
    %v623 = vunpack.c.l.b16 %v288
    %v624 = vunpack.c.h.b16 %v288
    %v625 = vunpack.c.l.b16 %v289
    %v626 = vunpack.c.h.b16 %v289
    %v627 = vunpack.c.l.b16 %v290
    %v628 = vunpack.c.h.b16 %v290
    %v629 = vunpack.c.l.b16 %v291
    %v630 = vunpack.c.h.b16 %v291
    %v631 = vunpack.c.l.b16 %v292
    %v632 = vunpack.c.h.b16 %v292
    %v633 = vunpack.c.l.b16 %v293
    %v634 = vunpack.c.h.b16 %v293
    %v635 = vunpack.c.l.b16 %v294
    %v636 = vunpack.c.h.b16 %v294
    %v637 = vunpack.c.l.b16 %v295
    %v638 = vunpack.c.h.b16 %v295
    %v639 = vunpack.c.l.b16 %v296
    %v640 = vunpack.c.h.b16 %v296
    %v641 = vunpack.c.l.b16 %v297
    %v642 = vunpack.c.h.b16 %v297
    %v643 = vunpack.c.l.b16 %v298
    %v644 = vunpack.c.h.b16 %v298
    %v645 = vunpack.c.l.b16 %v299
    %v646 = vunpack.c.h.b16 %v299
    %v647 = vunpack.c.l.b16 %v300
    %v648 = vunpack.c.h.b16 %v300
    %v649 = vunpack.c.l.b16 %v301
    %v650 = vunpack.c.h.b16 %v301
    %v651 = vunpack.c.l.b16 %v302
    %v652 = vunpack.c.h.b16 %v302
    %v653 = vunpack.c.l.b16 %v303
    %v654 = vunpack.c.h.b16 %v303
    %v655 = vunpack.c.l.b16 %v304
    %v656 = vunpack.c.h.b16 %v304
    %v657 = vunpack.c.l.b16 %v305
    %v658 = vunpack.c.h.b16 %v305
    %v659 = vunpack.c.l.b16 %v306
    %v660 = vunpack.c.h.b16 %v306
    %v661 = vunpack.c.l.b16 %v307
    %v662 = vunpack.c.h.b16 %v307
    %v663 = vunpack.c.l.b16 %v308
    %v664 = vunpack.c.h.b16 %v308
    %v665 = vunpack.c.l.b16 %v309
    %v666 = vunpack.c.h.b16 %v309
    %v667 = vunpack.c.l.b16 %v310
    %v668 = vunpack.c.h.b16 %v310
    %v669 = vunpack.c.l.b16 %v311
    %v670 = vunpack.c.h.b16 %v311
    %v671 = vunpack.c.l.b16 %v312
    %v672 = vunpack.c.h.b16 %v312
    %v673 = vunpack.c.l.b16 %v313
    %v674 = vunpack.c.h.b16 %v313
    %v675 = vunpack.c.l.b16 %v314
    %v676 = vunpack.c.h.b16 %v314
    %v677 = vunpack.c.l.b16 %v315
    %v678 = vunpack.c.h.b16 %v315
    %v679 = vunpack.c.l.b16 %v316
    %v680 = vunpack.c.h.b16 %v316
    %v681 = vunpack.c.l.b16 %v317
    %v682 = vunpack.c.h.b16 %v317
    %v683 = vunpack.c.l.b16 %v318
    %v684 = vunpack.c.h.b16 %v318
    %v685 = vunpack.c.l.b16 %v319
    %v686 = vunpack.c.h.b16 %v319
    %v687 = vunpack.c.l.b16 %v320
    %v688 = vunpack.c.h.b16 %v320
    %v689 = vunpack.c.l.b16 %v321
    %v690 = vunpack.c.h.b16 %v321
    %v691 = vunpack.c.l.b16 %v322
    %v692 = vunpack.c.h.b16 %v322
    %v693 = vunpack.c.l.b16 %v323
    %v694 = vunpack.c.h.b16 %v323
    %v695 = vunpack.c.l.b16 %v324
    %v696 = vunpack.c.h.b16 %v324
    %v697 = vunpack.c.l.b16 %v325
    %v698 = vunpack.c.h.b16 %v325
    %v699 = vunpack.c.l.b16 %v326
    %v700 = vunpack.c.h.b16 %v326
    %v701 = vunpack.c.l.b16 %v327
    %v702 = vunpack.c.h.b16 %v327
    %v703 = vunpack.c.l.b16 %v328
    %v704 = vunpack.c.h.b16 %v328
    %v705 = vunpack.c.l.b16 %v329
    %v706 = vunpack.c.h.b16 %v329
    %v707 = vunpack.c.l.b16 %v330
    %v708 = vunpack.c.h.b16 %v330
    %v709 = vunpack.c.l.b16 %v331
    %v710 = vunpack.c.h.b16 %v331
    %v711 = vunpack.c.l.b16 %v332
    %v712 = vunpack.c.h.b16 %v332
    %v713 = vunpack.c.l.b16 %v333
    %v714 = vunpack.c.h.b16 %v333
    %v715 = vunpack.c.l.b16 %v334
    %v716 = vunpack.c.h.b16 %v334
    %v717 = vunpack.c.l.b16 %v335
    %v718 = vunpack.c.h.b16 %v335
    %v719 = vunpack.c.l.b16 %v336
    %v720 = vunpack.c.h.b16 %v336
    %v721 = vunpack.c.l.b16 %v337
    %v722 = vunpack.c.h.b16 %v337
    %v723 = vunpack.c.l.b16 %v338
    %v724 = vunpack.c.h.b16 %v338
    %v725 = vunpack.c.l.b16 %v339
    %v726 = vunpack.c.h.b16 %v339
    %v727 = vunpack.c.l.b16 %v340
    %v728 = vunpack.c.h.b16 %v340
    %v729 = vunpack.c.l.b16 %v341
    %v730 = vunpack.c.h.b16 %v341
    %v731 = vunpack.c.l.b16 %v342
    %v732 = vunpack.c.h.b16 %v342
    %v733 = vunpack.c.l.b16 %v343
    %v734 = vunpack.c.h.b16 %v343
    %v735 = vunpack.c.l.b16 %v344
    %v736 = vunpack.c.h.b16 %v344
    %v737 = vunpack.c.l.b16 %v345
    %v738 = vunpack.c.h.b16 %v345
    %v739 = vunpack.c.l.b16 %v346
    %v740 = vunpack.c.h.b16 %v346
    %v741 = vunpack.c.l.b16 %v347
    %v742 = vunpack.c.h.b16 %v347
    %v743 = vunpack.c.l.b16 %v348
    %v744 = vunpack.c.h.b16 %v348
    %v745 = vpack.c.b16 %v491, %v489
    %v746 = vpack.c.b16 %v492, %v490
    %v747 = vpack.c.b16 %v495, %v493
    %v748 = vpack.c.b16 %v496, %v494
    %v749 = vpack.c.b16 %v499, %v497
    %v750 = vpack.c.b16 %v500, %v498
    %v751 = vpack.c.b16 %v503, %v501
    %v752 = vpack.c.b16 %v504, %v502
    %v753 = vpack.c.b16 %v507, %v505
    %v754 = vpack.c.b16 %v508, %v506
    %v755 = vpack.c.b16 %v511, %v509
    %v756 = vpack.c.b16 %v512, %v510
    %v757 = vpack.c.b16 %v515, %v513
    %v758 = vpack.c.b16 %v516, %v514
    %v759 = vpack.c.b16 %v519, %v517
    %v760 = vpack.c.b16 %v520, %v518
    %v761 = vpack.c.b16 %v523, %v521
    %v762 = vpack.c.b16 %v524, %v522
    %v763 = vpack.c.b16 %v527, %v525
    %v764 = vpack.c.b16 %v528, %v526
    %v765 = vpack.c.b16 %v531, %v529
    %v766 = vpack.c.b16 %v532, %v530
    %v767 = vpack.c.b16 %v535, %v533
    %v768 = vpack.c.b16 %v536, %v534
    %v769 = vpack.c.b16 %v539, %v537
    %v770 = vpack.c.b16 %v540, %v538
    %v771 = vpack.c.b16 %v543, %v541
    %v772 = vpack.c.b16 %v544, %v542
    %v773 = vpack.c.b16 %v547, %v545
    %v774 = vpack.c.b16 %v548, %v546
    %v775 = vpack.c.b16 %v551, %v549
    %v776 = vpack.c.b16 %v552, %v550
    %v777 = vpack.c.b16 %v555, %v553
    %v778 = vpack.c.b16 %v556, %v554
    %v779 = vpack.c.b16 %v559, %v557
    %v780 = vpack.c.b16 %v560, %v558
    %v781 = vpack.c.b16 %v563, %v561
    %v782 = vpack.c.b16 %v564, %v562
    %v783 = vpack.c.b16 %v567, %v565
    %v784 = vpack.c.b16 %v568, %v566
    %v785 = vpack.c.b16 %v571, %v569
    %v786 = vpack.c.b16 %v572, %v570
    %v787 = vpack.c.b16 %v575, %v573
    %v788 = vpack.c.b16 %v576, %v574
    %v789 = vpack.c.b16 %v579, %v577
    %v790 = vpack.c.b16 %v580, %v578
    %v791 = vpack.c.b16 %v583, %v581
    %v792 = vpack.c.b16 %v584, %v582
    %v793 = vpack.c.b16 %v587, %v585
    %v794 = vpack.c.b16 %v588, %v586
    %v795 = vpack.c.b16 %v591, %v589
    %v796 = vpack.c.b16 %v592, %v590
    %v797 = vpack.c.b16 %v595, %v593
    %v798 = vpack.c.b16 %v596, %v594
    %v799 = vpack.c.b16 %v599, %v597
    %v800 = vpack.c.b16 %v600, %v598
    %v801 = vpack.c.b16 %v603, %v601
    %v802 = vpack.c.b16 %v604, %v602
    %v803 = vpack.c.b16 %v607, %v605
    %v804 = vpack.c.b16 %v608, %v606
    %v805 = vpack.c.b16 %v611, %v609
    %v806 = vpack.c.b16 %v612, %v610
    %v807 = vpack.c.b16 %v615, %v613
    %v808 = vpack.c.b16 %v616, %v614
    %v809 = vpack.c.b16 %v619, %v617
    %v810 = vpack.c.b16 %v620, %v618
    %v811 = vpack.c.b16 %v623, %v621
    %v812 = vpack.c.b16 %v624, %v622
    %v813 = vpack.c.b16 %v627, %v625
    %v814 = vpack.c.b16 %v628, %v626
    %v815 = vpack.c.b16 %v631, %v629
    %v816 = vpack.c.b16 %v632, %v630
    %v817 = vpack.c.b16 %v635, %v633
    %v818 = vpack.c.b16 %v636, %v634
    %v819 = vpack.c.b16 %v639, %v637
    %v820 = vpack.c.b16 %v640, %v638
    %v821 = vpack.c.b16 %v643, %v641
    %v822 = vpack.c.b16 %v644, %v642
    %v823 = vpack.c.b16 %v647, %v645
    %v824 = vpack.c.b16 %v648, %v646
    %v825 = vpack.c.b16 %v651, %v649
    %v826 = vpack.c.b16 %v652, %v650
    %v827 = vpack.c.b16 %v655, %v653
    %v828 = vpack.c.b16 %v656, %v654
    %v829 = vpack.c.b16 %v659, %v657
    %v830 = vpack.c.b16 %v660, %v658
    %v831 = vpack.c.b16 %v663, %v661
    %v832 = vpack.c.b16 %v664, %v662
    %v833 = vpack.c.b16 %v667, %v665
    %v834 = vpack.c.b16 %v668, %v666
    %v835 = vpack.c.b16 %v671, %v669
    %v836 = vpack.c.b16 %v672, %v670
    %v837 = vpack.c.b16 %v675, %v673
    %v838 = vpack.c.b16 %v676, %v674
    %v839 = vpack.c.b16 %v679, %v677
    %v840 = vpack.c.b16 %v680, %v678
    %v841 = vpack.c.b16 %v683, %v681
    %v842 = vpack.c.b16 %v684, %v682
    %v843 = vpack.c.b16 %v687, %v685
    %v844 = vpack.c.b16 %v688, %v686
    %v845 = vpack.c.b16 %v691, %v689
    %v846 = vpack.c.b16 %v692, %v690
    %v847 = vpack.c.b16 %v695, %v693
    %v848 = vpack.c.b16 %v696, %v694
    %v849 = vpack.c.b16 %v699, %v697
    %v850 = vpack.c.b16 %v700, %v698
    %v851 = vpack.c.b16 %v703, %v701
    %v852 = vpack.c.b16 %v704, %v702
    %v853 = vpack.c.b16 %v707, %v705
    %v854 = vpack.c.b16 %v708, %v706
    %v855 = vpack.c.b16 %v711, %v709
    %v856 = vpack.c.b16 %v712, %v710
    %v857 = vpack.c.b16 %v715, %v713
    %v858 = vpack.c.b16 %v716, %v714
    %v859 = vpack.c.b16 %v719, %v717
    %v860 = vpack.c.b16 %v720, %v718
    %v861 = vpack.c.b16 %v723, %v721
    %v862 = vpack.c.b16 %v724, %v722
    %v863 = vpack.c.b16 %v727, %v725
    %v864 = vpack.c.b16 %v728, %v726
    %v865 = vpack.c.b16 %v731, %v729
    %v866 = vpack.c.b16 %v732, %v730
    %v867 = vpack.c.b16 %v735, %v733
    %v868 = vpack.c.b16 %v736, %v734
    %v869 = vpack.c.b16 %v739, %v737
    %v870 = vpack.c.b16 %v740, %v738
    %v871 = vpack.c.b16 %v743, %v741
    %v872 = vpack.c.b16 %v744, %v742
    %1001 = vmatprep.subr.bf16.mxu0 %v746
    %1002 = vmatpush1.bf16.msra.mxu0 %v745
    %1003 = vmatprep.subr.bf16.mxu0 %v748
    %1004 = vmatpush1.bf16.msra.mxu0 %v747
    %1005 = vmatprep.subr.bf16.mxu0 %v750
    %1006 = vmatpush1.bf16.msra.mxu0 %v749
    %1007 = vmatprep.subr.bf16.mxu0 %v752
    %1008 = vmatpush1.bf16.msra.mxu0 %v751
    %1009 = vmatprep.subr.bf16.mxu0 %v754
    %1010 = vmatpush1.bf16.msra.mxu0 %v753
    %1011 = vmatprep.subr.bf16.mxu0 %v756
    %1012 = vmatpush1.bf16.msra.mxu0 %v755
    %1013 = vmatprep.subr.bf16.mxu0 %v758
    %1014 = vmatpush1.bf16.msra.mxu0 %v757
    %1015 = vmatprep.subr.bf16.mxu0 %v760
    %1016 = vmatpush1.bf16.msra.mxu0 %v759
    %1017 = vmatprep.subr.bf16.mxu0 %v762
    %1018 = vmatpush1.bf16.msra.mxu0 %v761
    %1019 = vmatprep.subr.bf16.mxu0 %v764
    %1020 = vmatpush1.bf16.msra.mxu0 %v763
    %1021 = vmatprep.subr.bf16.mxu0 %v766
    %1022 = vmatpush1.bf16.msra.mxu0 %v765
    %1023 = vmatprep.subr.bf16.mxu0 %v768
    %1024 = vmatpush1.bf16.msra.mxu0 %v767
    %1025 = vmatprep.subr.bf16.mxu0 %v770
    %1026 = vmatpush1.bf16.msra.mxu0 %v769
    %1027 = vmatprep.subr.bf16.mxu0 %v772
    %1028 = vmatpush1.bf16.msra.mxu0 %v771
    %1029 = vmatprep.subr.bf16.mxu0 %v774
    %1030 = vmatpush1.bf16.msra.mxu0 %v773
    %1031 = vmatprep.subr.bf16.mxu0 %v776
    %1032 = vmatpush1.bf16.msra.mxu0 %v775
    %1033 = vmatprep.mubr.bf16.mxu0 %v214
    %1034 = vmatmul.mubr.bf16.gmra.mrb[0].mxu0 %v213
    %v1035 = vpop.f32.mrb[0].mxu0
    %v1036 = vadd.f32 %v354, %v1035
    %v1037 = vpop.f32.mrb[0].mxu0
    %v1038 = vadd.f32 %v358, %v1037
    %v1039 = vpop.f32.mrb[0].mxu0
    %v1040 = vpop.f32.mrb[0].mxu0
    %1041 = vdwg.mxu0
    %1042 = vmatprep.subr.bf16.mxu0 %v778
    %1043 = vmatpush1.bf16.msra.mxu0 %v777
    %1044 = vmatprep.subr.bf16.mxu0 %v780
    %1045 = vmatpush1.bf16.msra.mxu0 %v779
    %1046 = vmatprep.subr.bf16.mxu0 %v782
    %1047 = vmatpush1.bf16.msra.mxu0 %v781
    %1048 = vmatprep.subr.bf16.mxu0 %v784
    %1049 = vmatpush1.bf16.msra.mxu0 %v783
    %1050 = vmatprep.subr.bf16.mxu0 %v786
    %1051 = vmatpush1.bf16.msra.mxu0 %v785
    %1052 = vmatprep.subr.bf16.mxu0 %v788
    %1053 = vmatpush1.bf16.msra.mxu0 %v787
    %1054 = vmatprep.subr.bf16.mxu0 %v790
    %1055 = vmatpush1.bf16.msra.mxu0 %v789
    %1056 = vmatprep.subr.bf16.mxu0 %v792
    %1057 = vmatpush1.bf16.msra.mxu0 %v791
    %1058 = vmatprep.subr.bf16.mxu0 %v794
    %1059 = vmatpush1.bf16.msra.mxu0 %v793
    %1060 = vmatprep.subr.bf16.mxu0 %v796
    %1061 = vmatpush1.bf16.msra.mxu0 %v795
    %1062 = vmatprep.subr.bf16.mxu0 %v798
    %1063 = vmatpush1.bf16.msra.mxu0 %v797
    %1064 = vmatprep.subr.bf16.mxu0 %v800
    %1065 = vmatpush1.bf16.msra.mxu0 %v799
    %1066 = vmatprep.subr.bf16.mxu0 %v802
    %1067 = vmatpush1.bf16.msra.mxu0 %v801
    %1068 = vmatprep.subr.bf16.mxu0 %v804
    %1069 = vmatpush1.bf16.msra.mxu0 %v803
    %1070 = vmatprep.subr.bf16.mxu0 %v806
    %1071 = vmatpush1.bf16.msra.mxu0 %v805
    %1072 = vmatprep.subr.bf16.mxu0 %v808
    %1073 = vmatpush1.bf16.msra.mxu0 %v807
    %1074 = vmatprep.mubr.bf16.mxu0 %v216
    %1075 = vmatmul.mubr.bf16.gmra.mrb[0].mxu0 %v215
    %v1076 = vpop.f32.mrb[0].mxu0
    %v1077 = vadd.f32 %v1036, %v1076
    %v1078 = vpop.f32.mrb[0].mxu0
    %v1079 = vadd.f32 %v1038, %v1078
    %v1080 = vpop.f32.mrb[0].mxu0
    %v1081 = vpop.f32.mrb[0].mxu0
    %1082 = vdwg.mxu0
    %1083 = vmatprep.subr.bf16.mxu0 %v810
    %1084 = vmatpush1.bf16.msra.mxu0 %v809
    %1085 = vmatprep.subr.bf16.mxu0 %v812
    %1086 = vmatpush1.bf16.msra.mxu0 %v811
    %1087 = vmatprep.subr.bf16.mxu0 %v814
    %1088 = vmatpush1.bf16.msra.mxu0 %v813
    %1089 = vmatprep.subr.bf16.mxu0 %v816
    %1090 = vmatpush1.bf16.msra.mxu0 %v815
    %1091 = vmatprep.subr.bf16.mxu0 %v818
    %1092 = vmatpush1.bf16.msra.mxu0 %v817
    %1093 = vmatprep.subr.bf16.mxu0 %v820
    %1094 = vmatpush1.bf16.msra.mxu0 %v819
    %1095 = vmatprep.subr.bf16.mxu0 %v822
    %1096 = vmatpush1.bf16.msra.mxu0 %v821
    %1097 = vmatprep.subr.bf16.mxu0 %v824
    %1098 = vmatpush1.bf16.msra.mxu0 %v823
    %1099 = vmatprep.subr.bf16.mxu0 %v826
    %1100 = vmatpush1.bf16.msra.mxu0 %v825
    %1101 = vmatprep.subr.bf16.mxu0 %v828
    %1102 = vmatpush1.bf16.msra.mxu0 %v827
    %1103 = vmatprep.subr.bf16.mxu0 %v830
    %1104 = vmatpush1.bf16.msra.mxu0 %v829
    %1105 = vmatprep.subr.bf16.mxu0 %v832
    %1106 = vmatpush1.bf16.msra.mxu0 %v831
    %1107 = vmatprep.subr.bf16.mxu0 %v834
    %1108 = vmatpush1.bf16.msra.mxu0 %v833
    %1109 = vmatprep.subr.bf16.mxu0 %v836
    %1110 = vmatpush1.bf16.msra.mxu0 %v835
    %1111 = vmatprep.subr.bf16.mxu0 %v838
    %1112 = vmatpush1.bf16.msra.mxu0 %v837
    %1113 = vmatprep.subr.bf16.mxu0 %v840
    %1114 = vmatpush1.bf16.msra.mxu0 %v839
    %1115 = vmatprep.mubr.bf16.mxu0 %v218
    %1116 = vmatmul.mubr.bf16.gmra.mrb[0].mxu0 %v217
    %v1117 = vpop.f32.mrb[0].mxu0
    %v1118 = vadd.f32 %v1077, %v1117
    %v1119 = vpop.f32.mrb[0].mxu0
    %v1120 = vadd.f32 %v1079, %v1119
    %v1121 = vpop.f32.mrb[0].mxu0
    %v1122 = vpop.f32.mrb[0].mxu0
    %1123 = vdwg.mxu0
    %1124 = vmatprep.subr.bf16.mxu0 %v842
    %1125 = vmatpush1.bf16.msra.mxu0 %v841
    %1126 = vmatprep.subr.bf16.mxu0 %v844
    %1127 = vmatpush1.bf16.msra.mxu0 %v843
    %1128 = vmatprep.subr.bf16.mxu0 %v846
    %1129 = vmatpush1.bf16.msra.mxu0 %v845
    %1130 = vmatprep.subr.bf16.mxu0 %v848
    %1131 = vmatpush1.bf16.msra.mxu0 %v847
    %1132 = vmatprep.subr.bf16.mxu0 %v850
    %1133 = vmatpush1.bf16.msra.mxu0 %v849
    %1134 = vmatprep.subr.bf16.mxu0 %v852
    %1135 = vmatpush1.bf16.msra.mxu0 %v851
    %1136 = vmatprep.subr.bf16.mxu0 %v854
    %1137 = vmatpush1.bf16.msra.mxu0 %v853
    %1138 = vmatprep.subr.bf16.mxu0 %v856
    %1139 = vmatpush1.bf16.msra.mxu0 %v855
    %1140 = vmatprep.subr.bf16.mxu0 %v858
    %1141 = vmatpush1.bf16.msra.mxu0 %v857
    %1142 = vmatprep.subr.bf16.mxu0 %v860
    %1143 = vmatpush1.bf16.msra.mxu0 %v859
    %1144 = vmatprep.subr.bf16.mxu0 %v862
    %1145 = vmatpush1.bf16.msra.mxu0 %v861
    %1146 = vmatprep.subr.bf16.mxu0 %v864
    %1147 = vmatpush1.bf16.msra.mxu0 %v863
    %1148 = vmatprep.subr.bf16.mxu0 %v866
    %1149 = vmatpush1.bf16.msra.mxu0 %v865
    %1150 = vmatprep.subr.bf16.mxu0 %v868
    %1151 = vmatpush1.bf16.msra.mxu0 %v867
    %1152 = vmatprep.subr.bf16.mxu0 %v870
    %1153 = vmatpush1.bf16.msra.mxu0 %v869
    %1154 = vmatprep.subr.bf16.mxu0 %v872
    %1155 = vmatpush1.bf16.msra.mxu0 %v871
    %1156 = vmatprep.mubr.bf16.mxu0 %v220
    %1157 = vmatmul.mubr.bf16.gmra.mrb[0].mxu0 %v219
    %v1158 = vpop.f32.mrb[0].mxu0
    %v1159 = vadd.f32 %v1118, %v1158
    %v1160 = vpop.f32.mrb[0].mxu0
    %v1161 = vadd.f32 %v1120, %v1160
    %v1162 = vpop.f32.mrb[0].mxu0
    %v1163 = vpop.f32.mrb[0].mxu0
    %1164 = vdwg.mxu0
    %v1165 = vmax.f32 %v1159, 0.0
    %v1166 = vmax.f32 %v1161, 0.0
    %v1167 = vpack.c.bf16 %v1165, %v1165
    %v1168 = vpack.c.bf16 %v1166, %v1166
    %v1169 = vld [vmem:[#allocation8] sm:$0xff]
    %v1170 = vld [vmem:[#allocation8 + $0x8] sm:$0xff]
    %v1171 = vld [vmem:[#allocation8 + $0x10] sm:$0xff]
    %v1172 = vld [vmem:[#allocation8 + $0x18] sm:$0xff]
    %v1173 = vld [vmem:[#allocation8 + $0x20] sm:$0xff]
    %v1174 = vld [vmem:[#allocation8 + $0x28] sm:$0xff]
    %v1175 = vld [vmem:[#allocation8 + $0x30] sm:$0xff]
    %v1176 = vld [vmem:[#allocation8 + $0x38] sm:$0xff]
    %v1177 = vld [vmem:[#allocation8 + $0x40] sm:$0xff]
    %v1178 = vld [vmem:[#allocation8 + $0x48] sm:$0xff]
    %v1179 = vld [vmem:[#allocation8 + $0x50] sm:$0xff]
    %v1180 = vld [vmem:[#allocation8 + $0x58] sm:$0xff]
    %v1181 = vld [vmem:[#allocation8 + $0x60] sm:$0xff]
    %v1182 = vld [vmem:[#allocation8 + $0x68] sm:$0xff]
    %v1183 = vld [vmem:[#allocation8 + $0x70] sm:$0xff]
    %v1184 = vld [vmem:[#allocation8 + $0x78] sm:$0xff]
    %v1185 = vld [vmem:[#allocation8 + $0x80] sm:$0xff]
    %v1186 = vld [vmem:[#allocation8 + $0x88] sm:$0xff]
    %v1187 = vld [vmem:[#allocation8 + $0x90] sm:$0xff]
    %v1188 = vld [vmem:[#allocation8 + $0x98] sm:$0xff]
    %v1189 = vld [vmem:[#allocation8 + $0xa0] sm:$0xff]
    %v1190 = vld [vmem:[#allocation8 + $0xa8] sm:$0xff]
    %v1191 = vld [vmem:[#allocation8 + $0xb0] sm:$0xff]
    %v1192 = vld [vmem:[#allocation8 + $0xb8] sm:$0xff]
    %v1193 = vld [vmem:[#allocation8 + $0xc0] sm:$0xff]
    %v1194 = vld [vmem:[#allocation8 + $0xc8] sm:$0xff]
    %v1195 = vld [vmem:[#allocation8 + $0xd0] sm:$0xff]
    %v1196 = vld [vmem:[#allocation8 + $0xd8] sm:$0xff]
    %v1197 = vld [vmem:[#allocation8 + $0xe0] sm:$0xff]
    %v1198 = vld [vmem:[#allocation8 + $0xe8] sm:$0xff]
    %v1199 = vld [vmem:[#allocation8 + $0xf0] sm:$0xff]
    %v1200 = vld [vmem:[#allocation8 + $0xf8] sm:$0xff]
    %v1201 = vld [vmem:[#allocation10] sm:$0x3]
    %v1203 = vlaneseq
    %v1204 = vshrl.u32 %v1203, 7
    %v1205 = vsub.s32 0, %v1204
    %v1206 = vrot.slane %v1201, %v1205
    %v1207 = vlaneseq
    %v1208 = vshrl.u32 %v1207, 7
    %v1209 = vsub.s32 1, %v1208
    %v1210 = vrot.slane %v1201, %v1209
    %v1245 = vunpack.c.l.b16 %v1169
    %v1246 = vunpack.c.h.b16 %v1169
    %v1247 = vunpack.c.l.b16 %v1170
    %v1248 = vunpack.c.h.b16 %v1170
    %v1249 = vunpack.c.l.b16 %v1171
    %v1250 = vunpack.c.h.b16 %v1171
    %v1251 = vunpack.c.l.b16 %v1172
    %v1252 = vunpack.c.h.b16 %v1172
    %v1253 = vunpack.c.l.b16 %v1173
    %v1254 = vunpack.c.h.b16 %v1173
    %v1255 = vunpack.c.l.b16 %v1174
    %v1256 = vunpack.c.h.b16 %v1174
    %v1257 = vunpack.c.l.b16 %v1175
    %v1258 = vunpack.c.h.b16 %v1175
    %v1259 = vunpack.c.l.b16 %v1176
    %v1260 = vunpack.c.h.b16 %v1176
    %v1261 = vunpack.c.l.b16 %v1177
    %v1262 = vunpack.c.h.b16 %v1177
    %v1263 = vunpack.c.l.b16 %v1178
    %v1264 = vunpack.c.h.b16 %v1178
    %v1265 = vunpack.c.l.b16 %v1179
    %v1266 = vunpack.c.h.b16 %v1179
    %v1267 = vunpack.c.l.b16 %v1180
    %v1268 = vunpack.c.h.b16 %v1180
    %v1269 = vunpack.c.l.b16 %v1181
    %v1270 = vunpack.c.h.b16 %v1181
    %v1271 = vunpack.c.l.b16 %v1182
    %v1272 = vunpack.c.h.b16 %v1182
    %v1273 = vunpack.c.l.b16 %v1183
    %v1274 = vunpack.c.h.b16 %v1183
    %v1275 = vunpack.c.l.b16 %v1184
    %v1276 = vunpack.c.h.b16 %v1184
    %v1277 = vunpack.c.l.b16 %v1185
    %v1278 = vunpack.c.h.b16 %v1185
    %v1279 = vunpack.c.l.b16 %v1186
    %v1280 = vunpack.c.h.b16 %v1186
    %v1281 = vunpack.c.l.b16 %v1187
    %v1282 = vunpack.c.h.b16 %v1187
    %v1283 = vunpack.c.l.b16 %v1188
    %v1284 = vunpack.c.h.b16 %v1188
    %v1285 = vunpack.c.l.b16 %v1189
    %v1286 = vunpack.c.h.b16 %v1189
    %v1287 = vunpack.c.l.b16 %v1190
    %v1288 = vunpack.c.h.b16 %v1190
    %v1289 = vunpack.c.l.b16 %v1191
    %v1290 = vunpack.c.h.b16 %v1191
    %v1291 = vunpack.c.l.b16 %v1192
    %v1292 = vunpack.c.h.b16 %v1192
    %v1293 = vunpack.c.l.b16 %v1193
    %v1294 = vunpack.c.h.b16 %v1193
    %v1295 = vunpack.c.l.b16 %v1194
    %v1296 = vunpack.c.h.b16 %v1194
    %v1297 = vunpack.c.l.b16 %v1195
    %v1298 = vunpack.c.h.b16 %v1195
    %v1299 = vunpack.c.l.b16 %v1196
    %v1300 = vunpack.c.h.b16 %v1196
    %v1301 = vunpack.c.l.b16 %v1197
    %v1302 = vunpack.c.h.b16 %v1197
    %v1303 = vunpack.c.l.b16 %v1198
    %v1304 = vunpack.c.h.b16 %v1198
    %v1305 = vunpack.c.l.b16 %v1199
    %v1306 = vunpack.c.h.b16 %v1199
    %v1307 = vunpack.c.l.b16 %v1200
    %v1308 = vunpack.c.h.b16 %v1200
    %v1309 = vpack.c.b16 %v1247, %v1245
    %v1310 = vpack.c.b16 %v1248, %v1246
    %v1311 = vpack.c.b16 %v1251, %v1249
    %v1312 = vpack.c.b16 %v1252, %v1250
    %v1313 = vpack.c.b16 %v1255, %v1253
    %v1314 = vpack.c.b16 %v1256, %v1254
    %v1315 = vpack.c.b16 %v1259, %v1257
    %v1316 = vpack.c.b16 %v1260, %v1258
    %v1317 = vpack.c.b16 %v1263, %v1261
    %v1318 = vpack.c.b16 %v1264, %v1262
    %v1319 = vpack.c.b16 %v1267, %v1265
    %v1320 = vpack.c.b16 %v1268, %v1266
    %v1321 = vpack.c.b16 %v1271, %v1269
    %v1322 = vpack.c.b16 %v1272, %v1270
    %v1323 = vpack.c.b16 %v1275, %v1273
    %v1324 = vpack.c.b16 %v1276, %v1274
    %v1325 = vpack.c.b16 %v1279, %v1277
    %v1326 = vpack.c.b16 %v1280, %v1278
    %v1327 = vpack.c.b16 %v1283, %v1281
    %v1328 = vpack.c.b16 %v1284, %v1282
    %v1329 = vpack.c.b16 %v1287, %v1285
    %v1330 = vpack.c.b16 %v1288, %v1286
    %v1331 = vpack.c.b16 %v1291, %v1289
    %v1332 = vpack.c.b16 %v1292, %v1290
    %v1333 = vpack.c.b16 %v1295, %v1293
    %v1334 = vpack.c.b16 %v1296, %v1294
    %v1335 = vpack.c.b16 %v1299, %v1297
    %v1336 = vpack.c.b16 %v1300, %v1298
    %v1337 = vpack.c.b16 %v1303, %v1301
    %v1338 = vpack.c.b16 %v1304, %v1302
    %v1339 = vpack.c.b16 %v1307, %v1305
    %v1340 = vpack.c.b16 %v1308, %v1306
    %1373 = vmatprep.subr.bf16.mxu0 %v1310
    %1374 = vmatpush1.bf16.msra.mxu0 %v1309
    %1375 = vmatprep.subr.bf16.mxu0 %v1312
    %1376 = vmatpush1.bf16.msra.mxu0 %v1311
    %1377 = vmatprep.subr.bf16.mxu0 %v1314
    %1378 = vmatpush1.bf16.msra.mxu0 %v1313
    %1379 = vmatprep.subr.bf16.mxu0 %v1316
    %1380 = vmatpush1.bf16.msra.mxu0 %v1315
    %1381 = vmatprep.subr.bf16.mxu0 %v1318
    %1382 = vmatpush1.bf16.msra.mxu0 %v1317
    %1383 = vmatprep.subr.bf16.mxu0 %v1320
    %1384 = vmatpush1.bf16.msra.mxu0 %v1319
    %1385 = vmatprep.subr.bf16.mxu0 %v1322
    %1386 = vmatpush1.bf16.msra.mxu0 %v1321
    %1387 = vmatprep.subr.bf16.mxu0 %v1324
    %1388 = vmatpush1.bf16.msra.mxu0 %v1323
    %1389 = vmatprep.subr.bf16.mxu0 %v1326
    %1390 = vmatpush1.bf16.msra.mxu0 %v1325
    %1391 = vmatprep.subr.bf16.mxu0 %v1328
    %1392 = vmatpush1.bf16.msra.mxu0 %v1327
    %1393 = vmatprep.subr.bf16.mxu0 %v1330
    %1394 = vmatpush1.bf16.msra.mxu0 %v1329
    %1395 = vmatprep.subr.bf16.mxu0 %v1332
    %1396 = vmatpush1.bf16.msra.mxu0 %v1331
    %1397 = vmatprep.subr.bf16.mxu0 %v1334
    %1398 = vmatpush1.bf16.msra.mxu0 %v1333
    %1399 = vmatprep.subr.bf16.mxu0 %v1336
    %1400 = vmatpush1.bf16.msra.mxu0 %v1335
    %1401 = vmatprep.subr.bf16.mxu0 %v1338
    %1402 = vmatpush1.bf16.msra.mxu0 %v1337
    %1403 = vmatprep.subr.bf16.mxu0 %v1340
    %1404 = vmatpush1.bf16.msra.mxu0 %v1339
    %1405 = vmatprep.mubr.bf16.mxu0 %v1168
    %1406 = vmatmul.mubr.bf16.gmra.mrb[0].mxu0 %v1167
    %v1407 = vpop.f32.mrb[0].mxu0
    %v1408 = vadd.f32 %v1206, %v1407
    %v1409 = vpop.f32.mrb[0].mxu0
    %v1410 = vadd.f32 %v1210, %v1409
    %v1411 = vpop.f32.mrb[0].mxu0
    %v1412 = vpop.f32.mrb[0].mxu0
    %1413 = vdwg.mxu0
    %v1414 = vmax.f32 %v1408, 0.0
    %v1415 = vmax.f32 %v1410, 0.0
    %v1416 = vpack.c.bf16 %v1414, %v1414
    %v1417 = vpack.c.bf16 %v1415, %v1415
    %v1418 = vld [vmem:[#allocation11] sm:$0xf]
    %v1419 = vld [vmem:[#allocation11 + $0x4] sm:$0xf]
    %v1420 = vld [vmem:[#allocation11 + $0x8] sm:$0xf]
    %v1421 = vld [vmem:[#allocation11 + $0xc] sm:$0xf]
    %v1422 = vld [vmem:[#allocation11 + $0x10] sm:$0xf]
    %v1423 = vld [vmem:[#allocation11 + $0x14] sm:$0xf]
    %v1424 = vld [vmem:[#allocation11 + $0x18] sm:$0xf]
    %v1425 = vld [vmem:[#allocation11 + $0x1c] sm:$0xf]
    %v1426 = vld [vmem:[#allocation11 + $0x20] sm:$0xf]
    %v1427 = vld [vmem:[#allocation11 + $0x24] sm:$0xf]
    %v1428 = vld [vmem:[#allocation11 + $0x28] sm:$0xf]
    %v1429 = vld [vmem:[#allocation11 + $0x2c] sm:$0xf]
    %v1430 = vld [vmem:[#allocation11 + $0x30] sm:$0xf]
    %v1431 = vld [vmem:[#allocation11 + $0x34] sm:$0xf]
    %v1432 = vld [vmem:[#allocation11 + $0x38] sm:$0xf]
    %v1433 = vld [vmem:[#allocation11 + $0x3c] sm:$0xf]
    %v1434 = vld [vmem:[#allocation11 + $0x40] sm:$0xf]
    %v1435 = vld [vmem:[#allocation11 + $0x44] sm:$0xf]
    %v1436 = vld [vmem:[#allocation11 + $0x48] sm:$0xf]
    %v1437 = vld [vmem:[#allocation11 + $0x4c] sm:$0xf]
    %v1438 = vld [vmem:[#allocation11 + $0x50] sm:$0xf]
    %v1439 = vld [vmem:[#allocation11 + $0x54] sm:$0xf]
    %v1440 = vld [vmem:[#allocation11 + $0x58] sm:$0xf]
    %v1441 = vld [vmem:[#allocation11 + $0x5c] sm:$0xf]
    %v1442 = vld [vmem:[#allocation11 + $0x60] sm:$0xf]
    %v1443 = vld [vmem:[#allocation11 + $0x64] sm:$0xf]
    %v1444 = vld [vmem:[#allocation11 + $0x68] sm:$0xf]
    %v1445 = vld [vmem:[#allocation11 + $0x6c] sm:$0xf]
    %v1446 = vld [vmem:[#allocation11 + $0x70] sm:$0xf]
    %v1447 = vld [vmem:[#allocation11 + $0x74] sm:$0xf]
    %v1448 = vld [vmem:[#allocation11 + $0x78] sm:$0xf]
    %v1449 = vld [vmem:[#allocation11 + $0x7c] sm:$0xf]
    %v1450 = vld [vmem:[#allocation13] sm:$0x1]
    %v1452 = vlaneseq
    %v1453 = vshrl.u32 %v1452, 7
    %v1454 = vsub.s32 0, %v1453
    %v1455 = vrot.slane %v1450, %v1454
    %v1489 = vunpack.c.l.b16 %v1418
    %v1490 = vunpack.c.l.b16 %v1419
    %v1491 = vunpack.c.l.b16 %v1420
    %v1492 = vunpack.c.l.b16 %v1421
    %v1493 = vunpack.c.l.b16 %v1422
    %v1494 = vunpack.c.l.b16 %v1423
    %v1495 = vunpack.c.l.b16 %v1424
    %v1496 = vunpack.c.l.b16 %v1425
    %v1497 = vunpack.c.l.b16 %v1426
    %v1498 = vunpack.c.l.b16 %v1427
    %v1499 = vunpack.c.l.b16 %v1428
    %v1500 = vunpack.c.l.b16 %v1429
    %v1501 = vunpack.c.l.b16 %v1430
    %v1502 = vunpack.c.l.b16 %v1431
    %v1503 = vunpack.c.l.b16 %v1432
    %v1504 = vunpack.c.l.b16 %v1433
    %v1505 = vunpack.c.l.b16 %v1434
    %v1506 = vunpack.c.l.b16 %v1435
    %v1507 = vunpack.c.l.b16 %v1436
    %v1508 = vunpack.c.l.b16 %v1437
    %v1509 = vunpack.c.l.b16 %v1438
    %v1510 = vunpack.c.l.b16 %v1439
    %v1511 = vunpack.c.l.b16 %v1440
    %v1512 = vunpack.c.l.b16 %v1441
    %v1513 = vunpack.c.l.b16 %v1442
    %v1514 = vunpack.c.l.b16 %v1443
    %v1515 = vunpack.c.l.b16 %v1444
    %v1516 = vunpack.c.l.b16 %v1445
    %v1517 = vunpack.c.l.b16 %v1446
    %v1518 = vunpack.c.l.b16 %v1447
    %v1519 = vunpack.c.l.b16 %v1448
    %v1520 = vunpack.c.l.b16 %v1449
    %v1521 = vpack.c.b16 %v1490, %v1489
    %v1522 = vpack.c.b16 %v1492, %v1491
    %v1523 = vpack.c.b16 %v1494, %v1493
    %v1524 = vpack.c.b16 %v1496, %v1495
    %v1525 = vpack.c.b16 %v1498, %v1497
    %v1526 = vpack.c.b16 %v1500, %v1499
    %v1527 = vpack.c.b16 %v1502, %v1501
    %v1528 = vpack.c.b16 %v1504, %v1503
    %v1529 = vpack.c.b16 %v1506, %v1505
    %v1530 = vpack.c.b16 %v1508, %v1507
    %v1531 = vpack.c.b16 %v1510, %v1509
    %v1532 = vpack.c.b16 %v1512, %v1511
    %v1533 = vpack.c.b16 %v1514, %v1513
    %v1534 = vpack.c.b16 %v1516, %v1515
    %v1535 = vpack.c.b16 %v1518, %v1517
    %v1536 = vpack.c.b16 %v1520, %v1519
    %1553 = vmatprep.subr.bf16.mxu0 0
    %1554 = vmatpush1.bf16.msra.mxu0 %v1521
    %1555 = vmatprep.subr.bf16.mxu0 0
    %1556 = vmatpush1.bf16.msra.mxu0 %v1522
    %1557 = vmatprep.subr.bf16.mxu0 0
    %1558 = vmatpush1.bf16.msra.mxu0 %v1523
    %1559 = vmatprep.subr.bf16.mxu0 0
    %1560 = vmatpush1.bf16.msra.mxu0 %v1524
    %1561 = vmatprep.subr.bf16.mxu0 0
    %1562 = vmatpush1.bf16.msra.mxu0 %v1525
    %1563 = vmatprep.subr.bf16.mxu0 0
    %1564 = vmatpush1.bf16.msra.mxu0 %v1526
    %1565 = vmatprep.subr.bf16.mxu0 0
    %1566 = vmatpush1.bf16.msra.mxu0 %v1527
    %1567 = vmatprep.subr.bf16.mxu0 0
    %1568 = vmatpush1.bf16.msra.mxu0 %v1528
    %1569 = vmatprep.subr.bf16.mxu0 0
    %1570 = vmatpush1.bf16.msra.mxu0 %v1529
    %1571 = vmatprep.subr.bf16.mxu0 0
    %1572 = vmatpush1.bf16.msra.mxu0 %v1530
    %1573 = vmatprep.subr.bf16.mxu0 0
    %1574 = vmatpush1.bf16.msra.mxu0 %v1531
    %1575 = vmatprep.subr.bf16.mxu0 0
    %1576 = vmatpush1.bf16.msra.mxu0 %v1532
    %1577 = vmatprep.subr.bf16.mxu0 0
    %1578 = vmatpush1.bf16.msra.mxu0 %v1533
    %1579 = vmatprep.subr.bf16.mxu0 0
    %1580 = vmatpush1.bf16.msra.mxu0 %v1534
    %1581 = vmatprep.subr.bf16.mxu0 0
    %1582 = vmatpush1.bf16.msra.mxu0 %v1535
    %1583 = vmatprep.subr.bf16.mxu0 0
    %1584 = vmatpush1.bf16.msra.mxu0 %v1536
    %1585 = vmatprep.mubr.bf16.mxu0 %v1417
    %1586 = vmatmul.mubr.bf16.gmra.mrb[0].mxu0 %v1416
    %v1587 = vpop.f32.mrb[0].mxu0
    %v1588 = vadd.f32 %v1455, %v1587
    %v1589 = vpop.f32.mrb[0].mxu0
    %v1590 = vpop.f32.mrb[0].mxu0
    %v1591 = vpop.f32.mrb[0].mxu0
    %1592 = vdwg.mxu0
    %1593 = vst [vmem:[#allocation14] sm:$0xff] %v1588
    // Predicated region
    $region58: #{tpu_custom_call.1} parent=1 // pred_check
      _
    $region59: #{tpu_custom_call.1} parent=1 // pred_check_branch
      %1595 = sbr.rel (0) target = $region61
    $region60: #{tpu_custom_call.1} parent=1 // pred_region
      %s1597 = ssub.s32 128, 32
      %1598 = vsyncadd [#allocation4], %s1597
      %s1599 = sshll.u32 [#allocation14], 4
      %s1600 = int_to_ptr.vmem [resolvable:$true] %s1599
      %1605 = dma.vmem_to_hbm [thread:$0]  %s1600, 32, %s7, [#allocation4], 32, 32, 2
    $region61: #{tpu_custom_call.1} parent=1 // pred_fallthru
      _
    // Predicated region
    $region62: #{tpu_custom_call.1} parent=1 // pred_check
      _
    $region63: #{tpu_custom_call.1} parent=1 // pred_check_branch
      %1607 = sbr.rel (0) target = $region65
    $region64: #{tpu_custom_call.1} parent=1 // pred_region
      %1608 = dma.done [#allocation4], 128
    $region65: #{tpu_custom_call.1} parent=1 // pred_fallthru
      _
    %1609 = vsyncpa [#allocation3], 1
    %1610 = vsyncpa [#allocation6], 1
    %1611 = vsyncpa [#allocation9], 1
    %1612 = vsyncpa [#allocation12], 1
    %1613 = vsyncpa [#allocation4], 1

</llo_original>
